<compile_context>
chip_gen: v7x
topology: tpu7x:2x2x1
jax: 0.10.0
libtpu: 0.0.40
codegen_flags: <defaults>
</compile_context>

<pallas_src>
import functools

import jax
import jax.numpy as jnp
from jax.experimental import pallas as pl
from jax.experimental.pallas import tpu as pltpu


def _round_up(x, m):
    return ((x + m - 1) // m) * m


def _kg_loss_kernel(pos_ref, neg_ref, ind_ref, out_ref, *,
                    margin, fold, tile_m, rows_valid, tiles_per_core, ragged):
    c = pl.program_id(0)          # core-split index (v7x megacore)
    i = pl.program_id(1)          # row-tile index within this core's range

    @pl.when(i == 0)
    def _init():
        out_ref[...] = jnp.zeros_like(out_ref)

    pos = pos_ref[...].astype(jnp.float32)            # (tile_m, fold)
    neg = neg_ref[...].astype(jnp.float32)            # (tile_m, fold*K)

    if fold > 1:
        # Broadcast each pos value across its K-lane segment of the packed row
        # via one small matmul with a constant 0/1 indicator (idle MXU; exact).
        pos_b = jnp.dot(pos, ind_ref[...], preferred_element_type=jnp.float32)
    else:
        pos_b = pos                                    # (tile_m, 1) broadcasts over K

    # relu(margin - (pos - neg)) == max(margin - pos + neg, 0)
    hinge = jnp.maximum(margin - pos_b + neg, 0.0)     # (tile_m, fold*K)
    row_sums = jnp.sum(hinge, axis=1, keepdims=True)   # (tile_m, 1)

    if ragged:
        # Mask packed rows past the real data (ragged last tile / phantom tile
        # of the 2-way core split).  Applied after the row reduction so any
        # garbage from the out-of-range block padding is discarded.
        # Cost is ~1/(fold*K) of the hinge math -> left ungated.
        g = c * tiles_per_core + i
        row = g * tile_m + jax.lax.broadcasted_iota(jnp.int32, (tile_m, 1), 0)
        row_sums = jnp.where(row < rows_valid, row_sums, 0.0)

    # Per-tile (1,1) partial accumulated into the resident per-core output
    # block (broadcast across the (8,128) block; wrapper reads element [0,0]).
    out_ref[...] += jnp.sum(row_sums, keepdims=True)


def _choose_fold(n, k):
    """Smallest power-of-two fold (>=8) dividing N whose packed row reaches
    ~1024 lanes (else the largest available); 1 means no packing."""
    best = 1
    for f in (8, 16, 32, 64, 128):
        if n % f == 0 and f * k <= 32768:
            best = f
            if f * k >= 1024:
                break
    return best


def _vmem_budget_bytes():
    try:
        cap = int(pltpu.get_tpu_info().vmem_capacity_bytes)
    except Exception:
        cap = 64 * 1024 * 1024            # conservative (v7x-sized) fallback
    # ~1/4 of physical VMEM: ~32 MiB on v5e/v6e (128 MiB), ~16 MiB on v7x (64 MiB).
    return max(8 * 1024 * 1024, min(48 * 1024 * 1024, cap // 4))


def _clamp_tile(tile, m_rows):
    if m_rows <= 8:
        return m_rows                      # full-dim block (allowed)
    return int(max(8, min((tile // 8) * 8, (m_rows // 8) * 8)))


def _choose_tile_m(m_rows, row_width, pos_width, neg_itemsize, pos_itemsize,
                   vmem_budget_bytes):
    row_lanes = _round_up(row_width, 128)
    pos_lanes = _round_up(pos_width, 128)
    per_row = (2 * row_lanes * neg_itemsize        # double-buffered neg tile
               + 2 * pos_lanes * pos_itemsize      # double-buffered pos tile
               + 3 * row_lanes * 4)                # f32 intermediates (pos_b, hinge)
    return _clamp_tile(vmem_budget_bytes // per_row, m_rows)


def standard_kg_loss(pos_scores, neg_scores, margin=1.0, *, tile_rows=None):
    """JAX/Pallas equivalent of StandardKGLoss.forward."""
    pos = jnp.asarray(pos_scores)
    neg = jnp.asarray(neg_scores)
    # Keep bf16/f16 inputs narrow in HBM/VMEM; math is upcast to f32 in-kernel.
    if pos.dtype not in (jnp.float32, jnp.bfloat16, jnp.float16):
        pos = pos.astype(jnp.float32)
    if neg.dtype not in (jnp.float32, jnp.bfloat16, jnp.float16):
        neg = neg.astype(jnp.float32)

    pos = pos.reshape(-1)                     # (N,)
    n = pos.shape[0]
    neg = neg.reshape(n, -1)                  # (N, K)
    k = neg.shape[1]

    fold = _choose_fold(n, k)
    m_rows = n // fold                        # packed rows
    row_width = fold * k
    pos2 = pos.reshape(m_rows, fold)          # free row-major views
    neg2 = neg.reshape(m_rows, row_width)

    # Constant 0/1 indicator: ind[f, f*K + j] = 1  (pos lane-broadcast matrix).
    if fold > 1:
        seg = jnp.arange(fold, dtype=jnp.int32)[:, None]
        col = jnp.arange(row_width, dtype=jnp.int32)[None, :]
        ind = ((col >= seg * k) & (col < (seg + 1) * k)).astype(jnp.float32)
    else:
        ind = jnp.ones((1, k), jnp.float32)   # unused when fold == 1

    budget = _vmem_budget_bytes()
    if tile_rows is None:
        tile_m = _choose_tile_m(m_rows, row_width, fold,
                                neg2.dtype.itemsize, pos2.dtype.itemsize,
                                budget)
    else:
        tile_m = _clamp_tile(int(tile_rows), m_rows)

    nblocks = pl.cdiv(m_rows, tile_m)
    tiles_per_core = pl.cdiv(nblocks, 2)      # 2-way split (v7x megacore)
    ragged = (2 * tiles_per_core * tile_m) != m_rows
    inv_count = 1.0 / float(n * k)

    def row_block(c, i):
        # Clamp the (at most one) phantom tile of the 2-way split back in range;
        # its contribution is zeroed by the in-kernel row mask.
        return (jnp.minimum(c * tiles_per_core + i, nblocks - 1), 0)

    kernel = functools.partial(
        _kg_loss_kernel,
        margin=float(margin), fold=fold, tile_m=tile_m,
        rows_valid=m_rows, tiles_per_core=tiles_per_core, ragged=ragged)

    cost = pl.CostEstimate(
        flops=4 * n * k + (2 * n * fold * k if fold > 1 else 0),
        transcendentals=0,
        bytes_accessed=(neg2.size * neg2.dtype.itemsize
                        + pos2.size * pos2.dtype.itemsize
                        + ind.size * ind.dtype.itemsize
                        + 16 * 128 * 4))

    partials = pl.pallas_call(
        kernel,
        out_shape=jax.ShapeDtypeStruct((16, 128), jnp.float32),
        grid_spec=pltpu.PrefetchScalarGridSpec(
            num_scalar_prefetch=0,
            grid=(2, tiles_per_core),
            in_specs=[
                pl.BlockSpec((tile_m, fold), row_block),        # pos (packed)
                pl.BlockSpec((tile_m, row_width), row_block),   # neg (packed)
                pl.BlockSpec(ind.shape, lambda c, i: (0, 0)),   # indicator (resident)
            ],
            out_specs=pl.BlockSpec((8, 128), lambda c, i: (c, 0)),
        ),
        compiler_params=pltpu.CompilerParams(
            dimension_semantics=("parallel", "arbitrary"),
            vmem_limit_bytes=int(budget + 8 * 1024 * 1024),
        ),
        cost_estimate=cost,
    )(pos2, neg2, ind)

    total = partials[0, 0] + partials[8, 0]   # per-core partial sums
    return total * inv_count


def _reference(pos_scores, neg_scores, margin):
    pos = jnp.asarray(pos_scores, jnp.float32).reshape(-1, 1)
    neg = jnp.asarray(neg_scores, jnp.float32).reshape(pos.shape[0], -1)
    return jnp.mean(jnp.maximum(margin - (pos - neg), 0.0))


if __name__ == "__main__":
    key = jax.random.PRNGKey(0)
    k1, k2, k3, k4, k5, k6 = jax.random.split(key, 6)

    # Case 1: small-K lane-dense packed path (fold > 1).
    N, K = 256, 16
    pos_scores = jax.random.normal(k1, (N,), dtype=jnp.float32)
    neg_scores = jax.random.normal(k2, (N, K), dtype=jnp.float32)
    loss = standard_kg_loss(pos_scores, neg_scores, margin=1.0)
    jax.block_until_ready(loss)
    ref = _reference(pos_scores, neg_scores, 1.0)
    assert jnp.allclose(loss, ref, rtol=1e-5, atol=1e-5), (loss, ref)

    # Case 2: fold==1 fallback, multi-tile accumulation, ragged last tile,
    # both halves of the 2-way split doing real work (tile_rows=16 forced).
    N2, K2 = 50, 16
    pos2 = jax.random.normal(k3, (N2,), dtype=jnp.float32)
    neg2 = jax.random.normal(k4, (N2, K2), dtype=jnp.float32)
    loss2 = standard_kg_loss(pos2, neg2, margin=0.5, tile_rows=16)
    jax.block_until_ready(loss2)
    ref2 = _reference(pos2, neg2, 0.5)
    assert jnp.allclose(loss2, ref2, rtol=1e-5, atol=1e-5), (loss2, ref2)

    # Case 3: odd N / odd K fallback (lane-sparse block, phantom tile masked).
    N3, K3 = 33, 7
    pos3 = jax.random.normal(k5, (N3,), dtype=jnp.float32)
    neg3 = jax.random.normal(k6, (N3, K3), dtype=jnp.float32)
    loss3 = standard_kg_loss(pos3, neg3, margin=1.0)
    jax.block_until_ready(loss3)
    ref3 = _reference(pos3, neg3, 1.0)
    assert jnp.allclose(loss3, ref3, rtol=1e-5, atol=1e-5), (loss3, ref3)

    print("KERNEL_OK")
</pallas_src>

<mosaic_0001>
module attributes {stable_mosaic.version = 11 : i64} {
  func.func @_kg_loss_kernel(%arg0: i32, %arg1: i32, %arg2: memref<4x64xf32, #tpu.memory_space<vmem>>, %arg3: memref<4x1024xf32, #tpu.memory_space<vmem>>, %arg4: memref<64x1024xf32, #tpu.memory_space<vmem>>, %arg5: memref<8x128xf32, #tpu.memory_space<vmem>>) attributes {dimension_semantics = [#tpu.dimension_semantics<parallel>, #tpu.dimension_semantics<arbitrary>], iteration_bounds = array<i64: 2, 1>, scalar_prefetch = 0 : i64, scratch_operands = 0 : i64, tpu.core_type = #tpu.core_type<tc>, window_params = [{transform_indices = @transform_0, window_bounds = array<i64: 4, 64>}, {transform_indices = @transform_1, window_bounds = array<i64: 4, 1024>}, {pipeline_mode = #tpu.pipeline_mode<synchronous>, transform_indices = @transform_2, window_bounds = array<i64: 64, 1024>}, {transform_indices = @transform_3, window_bounds = array<i64: 8, 128>}]} {
    %c0_i32 = arith.constant 0 : i32
    %0 = arith.cmpi eq, %arg1, %c0_i32 : i32
    %1 = arith.extui %0 : i1 to i32
    %c0_i32_0 = arith.constant 0 : i32
    %2 = arith.cmpi ne, %1, %c0_i32_0 : i32
    scf.if %2 {
      %cst_16 = arith.constant 0.000000e+00 : f32
      %33 = vector.broadcast %cst_16 : f32 to vector<8x128xf32>
      %c0_17 = arith.constant 0 : index
      %c0_18 = arith.constant 0 : index
      %34 = vector.load %arg5[%c0_17, %c0_18] : memref<8x128xf32, #tpu.memory_space<vmem>>, vector<8x128xf32>
      tpu.vector_store %arg5[%c0_17, %c0_18], %33 {strides = array<i32>} : memref<8x128xf32, #tpu.memory_space<vmem>>, vector<8x128xf32>,
    } else {
    }
    %c0 = arith.constant 0 : index
    %c0_1 = arith.constant 0 : index
    %3 = vector.load %arg2[%c0, %c0_1] : memref<4x64xf32, #tpu.memory_space<vmem>>, vector<4x64xf32>
    %c0_2 = arith.constant 0 : index
    %c0_3 = arith.constant 0 : index
    %4 = vector.load %arg3[%c0_2, %c0_3] : memref<4x1024xf32, #tpu.memory_space<vmem>>, vector<4x1024xf32>
    %c0_4 = arith.constant 0 : index
    %c0_5 = arith.constant 0 : index
    %5 = vector.load %arg4[%c0_4, %c0_5] : memref<64x1024xf32, #tpu.memory_space<vmem>>, vector<64x1024xf32>
    %cst = arith.constant dense<0.000000e+00> : vector<4x1024xf32>
    %6 = tpu.matmul %3, %5, %cst {dimension_numbers = #tpu.dot_dimension_numbers<[1], [0], [0], [1], [0, 0, 1, 1], [], []>} : vector<4x64xf32>, vector<64x1024xf32>, vector<4x1024xf32> -> vector<4x1024xf32>
    %cst_6 = arith.constant 1.000000e+00 : f32
    %7 = vector.broadcast %cst_6 : f32 to vector<4x1024xf32>
    %8 = arith.subf %7, %6 : vector<4x1024xf32>
    %9 = arith.addf %8, %4 : vector<4x1024xf32>
    %cst_7 = arith.constant 0.000000e+00 : f32
    %10 = vector.broadcast %cst_7 : f32 to vector<4x1024xf32>
    %11 = arith.maximumf %9, %10 : vector<4x1024xf32>
    %cst_8 = arith.constant dense<0.000000e+00> : vector<4xf32>
    %12 = vector.multi_reduction <add>, %11, %cst_8 [1] : vector<4x1024xf32> to vector<4xf32>
    %13 = vector.shape_cast %12 : vector<4xf32> to vector<4x1xf32>
    %c1_i32 = arith.constant 1 : i32
    %14 = arith.muli %arg0, %c1_i32 : i32
    %15 = arith.addi %14, %arg1 : i32
    %c4_i32 = arith.constant 4 : i32
    %16 = arith.muli %15, %c4_i32 : i32
    %17 = tpu.iota {dimensions = array<i32: 0>} : vector<4x1xi32>
    %18 = vector.broadcast %16 : i32 to vector<4x1xi32>
    %19 = arith.addi %18, %17 : vector<4x1xi32>
    %c4_i32_9 = arith.constant 4 : i32
    %20 = vector.broadcast %c4_i32_9 : i32 to vector<4x1xi32>
    %21 = arith.cmpi slt, %19, %20 : vector<4x1xi32>
    %cst_10 = arith.constant 0.000000e+00 : f32
    %22 = vector.broadcast %cst_10 : f32 to vector<4x1xf32>
    %23 = arith.select %21, %13, %22 : vector<4x1xi1>, vector<4x1xf32>
    %c0_11 = arith.constant 0 : index
    %c0_12 = arith.constant 0 : index
    %24 = vector.load %arg5[%c0_11, %c0_12] : memref<8x128xf32, #tpu.memory_space<vmem>>, vector<8x128xf32>
    %25 = vector.shape_cast %23 : vector<4x1xf32> to vector<1x4x1xf32>
    %cst_13 = arith.constant dense<0.000000e+00> : vector<1xf32>
    %26 = vector.multi_reduction <add>, %25, %cst_13 [1, 2] : vector<1x4x1xf32> to vector<1xf32>
    %27 = vector.shape_cast %26 : vector<1xf32> to vector<1x1x1xf32>
    %28 = vector.extract %27[0, 0, 0] : f32 from vector<1x1x1xf32>
    %29 = vector.broadcast %28 : f32 to vector<1x1xf32>
    %30 = vector.broadcast %29 : vector<1x1xf32> to vector<8x128xf32>
    %31 = arith.addf %24, %30 : vector<8x128xf32>
    %c0_14 = arith.constant 0 : index
    %c0_15 = arith.constant 0 : index
    %32 = vector.load %arg5[%c0_14, %c0_15] : memref<8x128xf32, #tpu.memory_space<vmem>>, vector<8x128xf32>
    tpu.vector_store %arg5[%c0_14, %c0_15], %31 {strides = array<i32>} : memref<8x128xf32, #tpu.memory_space<vmem>>, vector<8x128xf32>,
    return
  }
  func.func @transform_0(%arg0: i32, %arg1: i32) -> (i32, i32) {
    %c1_i32 = arith.constant 1 : i32
    %0 = arith.muli %arg0, %c1_i32 : i32
    %1 = arith.addi %0, %arg1 : i32
    %c0_i32 = arith.constant 0 : i32
    %2 = arith.minsi %1, %c0_i32 : i32
    %c0_i32_0 = arith.constant 0 : i32
    %c0_i32_1 = arith.constant 0 : i32
    return %2, %c0_i32_0 : i32, i32
  }
  func.func @transform_1(%arg0: i32, %arg1: i32) -> (i32, i32) {
    %c1_i32 = arith.constant 1 : i32
    %0 = arith.muli %arg0, %c1_i32 : i32
    %1 = arith.addi %0, %arg1 : i32
    %c0_i32 = arith.constant 0 : i32
    %2 = arith.minsi %1, %c0_i32 : i32
    %c0_i32_0 = arith.constant 0 : i32
    %c0_i32_1 = arith.constant 0 : i32
    return %2, %c0_i32_0 : i32, i32
  }
  func.func @transform_2(%arg0: i32, %arg1: i32) -> (i32, i32) {
    %c0_i32 = arith.constant 0 : i32
    %c0_i32_0 = arith.constant 0 : i32
    %c0_i32_1 = arith.constant 0 : i32
    return %c0_i32, %c0_i32_0 : i32, i32
  }
  func.func @transform_3(%arg0: i32, %arg1: i32) -> (i32, i32) {
    %c0_i32 = arith.constant 0 : i32
    %c0_i32_0 = arith.constant 0 : i32
    return %arg0, %c0_i32 : i32, i32
  }
}

</mosaic_0001>

<llo_original>
// kernel: tpu_custom_call.1
$region0: #{tpu_custom_call.1}
  #allocation0 [shape = 'u32[]', space=smem, size = 0x4, offset = 0x4, fixed_abs, tag = 'smem constant byte address 0x4 - core index']
  #allocation1 [shape = 'u32[144,128]{1,0:T(1,128)}', space=vmem, size = 0x12000, scoped, tag = 'internal scratch']
  %s0 = inlined_call_operand.hbm [shape: f32[4,64], index: 0, kind: input, shape index: {}]
  %s1 = inlined_call_operand.hbm [shape: f32[4,1024], index: 1, kind: input, shape index: {}]
  %s2 = inlined_call_operand.hbm [shape: f32[64,1024], index: 2, kind: input, shape index: {}]
  %s3 = inlined_call_operand.hbm [shape: f32[16,128], index: 3, kind: output, shape index: {}]
  %s4 = sld [smem:[#allocation0]]
  $region61: #{tpu_custom_call.1} parent=0
    _
  %s6 = ssub.s32 1, %s4
  %s7 = scalar_select 0, %s6, %s4
  $region1: #{tpu_custom_call.1} parent=0
    #allocation2 [shape = 'u8[4096]{0}', space=vmem, size = 0x1000, scoped, tag = 'input window, operand 0']
    #allocation3 [shape = 's32[2]{0}', space=sflag, size = 0x8, scoped, tag = 'scoped memory for tpu_custom_call.1']
    #allocation4 [shape = 's32[2]{0}', space=sflag, size = 0x8, scoped, tag = 'scoped memory for tpu_custom_call.1']
    #allocation5 [shape = 'u8[32768]{0}', space=vmem, size = 0x8000, scoped, tag = 'input window, operand 1']
    #allocation6 [shape = 's32[2]{0}', space=sflag, size = 0x8, scoped, tag = 'scoped memory for tpu_custom_call.1']
    #allocation7 [shape = 'u8[262144]{0}', space=vmem, size = 0x40000, scoped, tag = 'input window, operand 2, single buffered']
    #allocation8 [shape = 'u8[8192]{0}', space=vmem, size = 0x2000, scoped, tag = 'output window, operand 0']
    %8 = vsyncpa [#allocation3], 0
    %s9 = scalar_lea.sflag [#allocation3], 1
    %10 = vsyncpa %s9, 0
    %11 = vsyncpa [#allocation6], 0
    %s12 = scalar_lea.sflag [#allocation6], 1
    %13 = vsyncpa %s12, 0
    %14 = vsyncpa [#allocation4], 0
    %s15 = scalar_lea.sflag [#allocation4], 1
    %16 = vsyncpa %s15, 0
    loop: start=0, step=1, limit=4
    $region2: #{tpu_custom_call.1} parent=1 // loop_pre_header
      _
    $region3: #{tpu_custom_call.1} parent=1 // loop_header
      %s18 = sphi 0, %s22
      %p19 = scmp.ge.s32.totalorder %s18, 4
      %s25 = sphi 0, %s37
      %s26 = sphi 0, %s33
      %s27 = sphi 0, %s25
      %s28 = sphi 0, %s26
      %s29 = sphi 0, %s27
      %s30 = sphi 0, %s28
      %s46 = sphi 0, %s48
      %s49 = sphi 0, %s46
      %s50 = sphi 0, %s49
      %s66 = sphi 0, %s50
      %s78 = sphi 0, %s80
      %s81 = sphi 0, %s78
      %s82 = sphi 0, %s81
      %s98 = sphi 0, %s82
      %s102 = sphi 0, %s102
      %s104 = sphi 0, %s102
      %s105 = sphi 0, %s104
      %s119 = sphi 0, %s105
      %s125 = sphi 0, %s127
      %s128 = sphi 0, %s125
      %s129 = sphi 0, %s128
      %s145 = sphi 0, %s129
    $region4: #{tpu_custom_call.1} parent=1 // loop_header_branch
      %21 = sbr.rel (%p19) target = $region8
    $region5: #{tpu_custom_call.1} parent=1 // loop_body
      %s23 = ssub.s32 %s18, 1
      %s24 = ssub.s32 %s18, 2
      %s31 = sadd.s32 1, %s26
      %p32 = scmp.ge.s32.totalorder %s31, 1
      %s33 = scalar_select %p32, 0, %s31
      %s34 = sadd.s32 1, %s25
      %s35 = scalar_select %p32, %s34, %s25
      %p36 = scmp.ge.s32.totalorder %s35, 2
      %s37 = scalar_select %p36, 0, %s35
      %s38 = sadd.s32 %s25, %s26
      %p39 = scmp.lt.s32.totalorder %s38, 0
      %s40 = scalar_select %p39, %s38, 0
      %s41 = sadd.s32 %s37, %s33
      %p42 = scmp.lt.s32.totalorder %s41, 0
      %s43 = scalar_select %p42, %s41, 0
      %s44 = ssub.s32 %s40, %s43
      %p45 = scmp.eq.s32.totalorder %s44, 0
      %s47 = sadd.s32 %s46, 1
      %s48 = scalar_select %p45, %s46, %s47
      %p51 = pneg %p45
      %p52 = scmp.eq.s32.totalorder %s18, 1
      %p53 = por %p51, %p52
      %p54 = scmp.ne.s32.totalorder %s46, %s49
      %p55 = scmp.eq.s32.totalorder %s18, 0
      %p56 = por %p54, %p55
      %p57 = scmp.ne.s32.totalorder %s46, %s49
      %p58 = scmp.eq.s32.totalorder %s23, 1
      %p59 = por %p57, %p58
      %p60 = scmp.ne.s32.totalorder %s49, %s50
      %p61 = scmp.eq.s32.totalorder %s23, 0
      %p62 = por %p60, %p61
      %p63 = scmp.ne.s32.totalorder %s49, %s50
      %p64 = scmp.eq.s32.totalorder %s24, 1
      %p65 = por %p63, %p64
      %p67 = scmp.ne.s32.totalorder %s50, %s66
      %p68 = scmp.eq.s32.totalorder %s24, 0
      %p69 = por %p67, %p68
      %s70 = sadd.s32 %s25, %s26
      %p71 = scmp.lt.s32.totalorder %s70, 0
      %s72 = scalar_select %p71, %s70, 0
      %s73 = sadd.s32 %s37, %s33
      %p74 = scmp.lt.s32.totalorder %s73, 0
      %s75 = scalar_select %p74, %s73, 0
      %s76 = ssub.s32 %s72, %s75
      %p77 = scmp.eq.s32.totalorder %s76, 0
      %s79 = sadd.s32 %s78, 1
      %s80 = scalar_select %p77, %s78, %s79
      %p83 = pneg %p77
      %p84 = scmp.eq.s32.totalorder %s18, 1
      %p85 = por %p83, %p84
      %p86 = scmp.ne.s32.totalorder %s78, %s81
      %p87 = scmp.eq.s32.totalorder %s18, 0
      %p88 = por %p86, %p87
      %p89 = scmp.ne.s32.totalorder %s78, %s81
      %p90 = scmp.eq.s32.totalorder %s23, 1
      %p91 = por %p89, %p90
      %p92 = scmp.ne.s32.totalorder %s81, %s82
      %p93 = scmp.eq.s32.totalorder %s23, 0
      %p94 = por %p92, %p93
      %p95 = scmp.ne.s32.totalorder %s81, %s82
      %p96 = scmp.eq.s32.totalorder %s24, 1
      %p97 = por %p95, %p96
      %p99 = scmp.ne.s32.totalorder %s82, %s98
      %p100 = scmp.eq.s32.totalorder %s24, 0
      %p101 = por %p99, %p100
      %s103 = sadd.s32 %s102, 1
      %p106 = scmp.eq.s32.totalorder %s18, 1
      %p107 = scmp.ne.s32.totalorder %s102, %s104
      %p108 = scmp.eq.s32.totalorder %s18, 0
      %p109 = por %p107, %p108
      %p110 = scmp.ne.s32.totalorder %s102, %s104
      %p111 = scmp.eq.s32.totalorder %s23, 1
      %p112 = por %p110, %p111
      %p113 = scmp.ne.s32.totalorder %s104, %s105
      %p114 = scmp.eq.s32.totalorder %s23, 0
      %p115 = por %p113, %p114
      %p116 = scmp.ne.s32.totalorder %s104, %s105
      %p117 = scmp.eq.s32.totalorder %s24, 1
      %p118 = por %p116, %p117
      %p120 = scmp.ne.s32.totalorder %s105, %s119
      %p121 = scmp.eq.s32.totalorder %s24, 0
      %p122 = por %p120, %p121
      %s123 = ssub.s32 %s25, %s37
      %p124 = scmp.eq.s32.totalorder %s123, 0
      %s126 = sadd.s32 %s125, 1
      %s127 = scalar_select %p124, %s125, %s126
      %p130 = pneg %p124
      %p131 = scmp.eq.s32.totalorder %s18, 1
      %p132 = por %p130, %p131
      %p133 = scmp.ne.s32.totalorder %s125, %s128
      %p134 = scmp.eq.s32.totalorder %s18, 0
      %p135 = por %p133, %p134
      %p136 = scmp.ne.s32.totalorder %s125, %s128
      %p137 = scmp.eq.s32.totalorder %s23, 1
      %p138 = por %p136, %p137
      %p139 = scmp.ne.s32.totalorder %s128, %s129
      %p140 = scmp.eq.s32.totalorder %s23, 0
      %p141 = por %p139, %p140
      %p142 = scmp.ne.s32.totalorder %s128, %s129
      %p143 = scmp.eq.s32.totalorder %s24, 1
      %p144 = por %p142, %p143
      %p146 = scmp.ne.s32.totalorder %s129, %s145
      %p147 = scmp.eq.s32.totalorder %s24, 0
      %p148 = por %p146, %p147
      %p149 = scmp.le.s32.totalorder 1, %s18
      %p150 = scmp.lt.s32.totalorder %s18, 3
      %p151 = pnand %p149, %p150
      %p152 = pneg %p151
      // Predicated region
      $region9: #{tpu_custom_call.1} parent=5 // pred_check
        _
      $region10: #{tpu_custom_call.1} parent=5 // pred_check_branch
        %154 = sbr.rel (%p151) target = $region12
      $region11: #{tpu_custom_call.1} parent=5 // pred_region
        %s155 = ssub.s32 %s18, 1
        // Predicated region
        $region13: #{tpu_custom_call.1} parent=11 // pred_check
          %p156 = pneg %p115
        $region14: #{tpu_custom_call.1} parent=11 // pred_check_branch
          %158 = sbr.rel (%p156) target = $region16
        $region15: #{tpu_custom_call.1} parent=11 // pred_region
          %s160 = ssub.s32 8192, 8192
          %161 = vsyncadd [#allocation6], %s160
          %s162 = sshll.u32 [#allocation7], 4
          %s163 = int_to_ptr.vmem [resolvable:$true] %s162
          %168 = dma.hbm_to_vmem [thread:$0]  %s2, 8192, %s163, [#allocation6], 1024, 1024, 64
        $region16: #{tpu_custom_call.1} parent=11 // pred_fallthru
          _
      $region12: #{tpu_custom_call.1} parent=5 // pred_fallthru
        _
      %p169 = scmp.lt.s32.totalorder %s18, 2
      // Predicated region
      $region17: #{tpu_custom_call.1} parent=5 // pred_check
        %p170 = pneg %p169
      $region18: #{tpu_custom_call.1} parent=5 // pred_check_branch
        %172 = sbr.rel (%p170) target = $region20
      $region19: #{tpu_custom_call.1} parent=5 // pred_region
        // Predicated region
        $region21: #{tpu_custom_call.1} parent=19 // pred_check
          %p173 = pneg %p56
        $region22: #{tpu_custom_call.1} parent=19 // pred_check_branch
          %175 = sbr.rel (%p173) target = $region24
        $region23: #{tpu_custom_call.1} parent=19 // pred_region
          %s176 = sand.u32 %s46, 1
          %s177 = scalar_lea.sflag [#allocation3], %s176
          %s178 = sand.u32 %s46, 1
          %s179 = smul.addr %s178, 4
          %s180 = scalar_lea.vmem [#allocation2], %s179
          %s181 = sadd.s32 %s25, %s26
          %p182 = scmp.lt.s32.totalorder %s181, 0
          %s183 = scalar_select %p182, %s181, 0
          %s185 = ssub.s32 64, 64
          %186 = vsyncadd %s177, %s185
          %s187 = smul.addr %s183, 64
          %s188 = scalar_lea.hbm %s0, %s187
          %s190 = sshll.u32 %s180, 4
          %s191 = int_to_ptr.vmem [resolvable:$true] %s190
          %193 = dma.hbm_to_vmem [thread:$0]  %s188, 64, %s191, %s177
        $region24: #{tpu_custom_call.1} parent=19 // pred_fallthru
          _
        // Predicated region
        $region25: #{tpu_custom_call.1} parent=19 // pred_check
          %p194 = pneg %p88
        $region26: #{tpu_custom_call.1} parent=19 // pred_check_branch
          %196 = sbr.rel (%p194) target = $region28
        $region27: #{tpu_custom_call.1} parent=19 // pred_region
          %s197 = sand.u32 %s18, 1
          %s198 = scalar_lea.sflag [#allocation6], %s197
          %s199 = sand.u32 %s78, 1
          %s200 = smul.addr %s199, 32
          %s201 = scalar_lea.vmem [#allocation5], %s200
          %s202 = sadd.s32 %s25, %s26
          %p203 = scmp.lt.s32.totalorder %s202, 0
          %s204 = scalar_select %p203, %s202, 0
          %s206 = ssub.s32 512, 512
          %207 = vsyncadd %s198, %s206
          %s208 = smul.addr %s204, 8
          %s209 = smul.addr %s208, 64
          %s210 = scalar_lea.hbm %s1, %s209
          %s212 = sshll.u32 %s201, 4
          %s213 = int_to_ptr.vmem [resolvable:$true] %s212
          %215 = dma.hbm_to_vmem [thread:$0]  %s210, 512, %s213, %s198
        $region28: #{tpu_custom_call.1} parent=19 // pred_fallthru
          _
      $region20: #{tpu_custom_call.1} parent=5 // pred_fallthru
        _
      %p216 = scmp.le.s32.totalorder 1, %s18
      %p217 = scmp.lt.s32.totalorder %s18, 3
      %p218 = pnand %p216, %p217
      %p219 = pneg %p218
      // Predicated region
      $region29: #{tpu_custom_call.1} parent=5 // pred_check
        _
      $region30: #{tpu_custom_call.1} parent=5 // pred_check_branch
        %221 = sbr.rel (%p218) target = $region32
      $region31: #{tpu_custom_call.1} parent=5 // pred_region
        %s222 = ssub.s32 %s18, 1
        %s223 = sand.u32 %s49, 1
        %s224 = scalar_lea.sflag [#allocation3], %s223
        %s225 = sand.u32 %s49, 1
        %s226 = smul.addr %s225, 4
        %s227 = scalar_lea.vmem [#allocation2], %s226
        // Predicated region
        $region33: #{tpu_custom_call.1} parent=31 // pred_check
          %p228 = pneg %p62
        $region34: #{tpu_custom_call.1} parent=31 // pred_check_branch
          %230 = sbr.rel (%p228) target = $region36
        $region35: #{tpu_custom_call.1} parent=31 // pred_region
          %231 = dma.done %s224, 64
        $region36: #{tpu_custom_call.1} parent=31 // pred_fallthru
          _
        %s232 = sand.u32 %s23, 1
        %s233 = scalar_lea.sflag [#allocation6], %s232
        %s234 = sand.u32 %s81, 1
        %s235 = smul.addr %s234, 32
        %s236 = scalar_lea.vmem [#allocation5], %s235
        // Predicated region
        $region37: #{tpu_custom_call.1} parent=31 // pred_check
          %p237 = pneg %p94
        $region38: #{tpu_custom_call.1} parent=31 // pred_check_branch
          %239 = sbr.rel (%p237) target = $region40
        $region39: #{tpu_custom_call.1} parent=31 // pred_region
          %240 = dma.done %s233, 512
        $region40: #{tpu_custom_call.1} parent=31 // pred_fallthru
          _
        // Predicated region
        $region41: #{tpu_custom_call.1} parent=31 // pred_check
          %p241 = pneg %p115
        $region42: #{tpu_custom_call.1} parent=31 // pred_check_branch
          %243 = sbr.rel (%p241) target = $region44
        $region43: #{tpu_custom_call.1} parent=31 // pred_region
          %244 = dma.done [#allocation6], 8192
        $region44: #{tpu_custom_call.1} parent=31 // pred_fallthru
          _
        %s245 = sand.u32 %s49, 1
        %s246 = scalar_lea.sflag [#allocation3], %s245
        %s247 = sand.u32 %s49, 1
        %s248 = smul.addr %s247, 4
        %s249 = scalar_lea.vmem [#allocation2], %s248
        %p250 = pneg %p62
        %p251 = pneg %p59
        %s252 = sand.u32 %s23, 1
        %s253 = scalar_lea.sflag [#allocation6], %s252
        %s254 = sand.u32 %s81, 1
        %s255 = smul.addr %s254, 32
        %s256 = scalar_lea.vmem [#allocation5], %s255
        %p257 = pneg %p94
        %p258 = pneg %p91
        %p259 = pneg %p115
        %p260 = pneg %p112
        %p261 = pneg %p141
        %p262 = pneg %p138
        %s263 = sand.u32 %s128, 1
        %s264 = scalar_lea.sflag [#allocation4], %s263
        %s265 = sand.u32 %s128, 1
        %s266 = smul.addr %s265, 8
        %s267 = scalar_lea.vmem [#allocation8], %s266
        %s268 = sadd.s32 %s27, %s28
        %p269 = scmp.lt.s32.totalorder %s268, 0
        %s270 = scalar_select %p269, %s268, 0
        %s271 = sadd.s32 %s27, %s28
        %p272 = scmp.lt.s32.totalorder %s271, 0
        %s273 = scalar_select %p272, %s271, 0
        %p274 = scmp.eq.s32.totalorder %s28, 0
        // Predicated region
        $region45: #{tpu_custom_call.1} parent=31 // pred_check
          %p275 = pneg %p274
        $region46: #{tpu_custom_call.1} parent=31 // pred_check_branch
          %277 = sbr.rel (%p275) target = $region48
        $region47: #{tpu_custom_call.1} parent=31 // pred_region
          %278 = vst [vmem:[%s267] sm:$0xff] 0.0
        $region48: #{tpu_custom_call.1} parent=31 // pred_fallthru
          _
        %v279 = vld [vmem:[%s227] sm:$0xf]
        %v280 = vld [vmem:[%s236] sm:$0xff]
        %v281 = vld [vmem:[%s236 + $0x8] sm:$0xff]
        %v282 = vld [vmem:[%s236 + $0x10] sm:$0xff]
        %v283 = vld [vmem:[%s236 + $0x18] sm:$0xff]
        %v284 = vld [vmem:[#allocation7] sm:$0xff]
        %v285 = vld [vmem:[#allocation7 + $0x8] sm:$0xff]
        %v286 = vld [vmem:[#allocation7 + $0x10] sm:$0xff]
        %v287 = vld [vmem:[#allocation7 + $0x18] sm:$0xff]
        %v288 = vld [vmem:[#allocation7 + $0x20] sm:$0xff]
        %v289 = vld [vmem:[#allocation7 + $0x28] sm:$0xff]
        %v290 = vld [vmem:[#allocation7 + $0x30] sm:$0xff]
        %v291 = vld [vmem:[#allocation7 + $0x38] sm:$0xff]
        %v292 = vld [vmem:[#allocation7 + $0x40] sm:$0xff]
        %v293 = vld [vmem:[#allocation7 + $0x48] sm:$0xff]
        %v294 = vld [vmem:[#allocation7 + $0x50] sm:$0xff]
        %v295 = vld [vmem:[#allocation7 + $0x58] sm:$0xff]
        %v296 = vld [vmem:[#allocation7 + $0x60] sm:$0xff]
        %v297 = vld [vmem:[#allocation7 + $0x68] sm:$0xff]
        %v298 = vld [vmem:[#allocation7 + $0x70] sm:$0xff]
        %v299 = vld [vmem:[#allocation7 + $0x78] sm:$0xff]
        %v300 = vld [vmem:[#allocation7 + $0x80] sm:$0xff]
        %v301 = vld [vmem:[#allocation7 + $0x88] sm:$0xff]
        %v302 = vld [vmem:[#allocation7 + $0x90] sm:$0xff]
        %v303 = vld [vmem:[#allocation7 + $0x98] sm:$0xff]
        %v304 = vld [vmem:[#allocation7 + $0xa0] sm:$0xff]
        %v305 = vld [vmem:[#allocation7 + $0xa8] sm:$0xff]
        %v306 = vld [vmem:[#allocation7 + $0xb0] sm:$0xff]
        %v307 = vld [vmem:[#allocation7 + $0xb8] sm:$0xff]
        %v308 = vld [vmem:[#allocation7 + $0xc0] sm:$0xff]
        %v309 = vld [vmem:[#allocation7 + $0xc8] sm:$0xff]
        %v310 = vld [vmem:[#allocation7 + $0xd0] sm:$0xff]
        %v311 = vld [vmem:[#allocation7 + $0xd8] sm:$0xff]
        %v312 = vld [vmem:[#allocation7 + $0xe0] sm:$0xff]
        %v313 = vld [vmem:[#allocation7 + $0xe8] sm:$0xff]
        %v314 = vld [vmem:[#allocation7 + $0xf0] sm:$0xff]
        %v315 = vld [vmem:[#allocation7 + $0xf8] sm:$0xff]
        %v316 = vld [vmem:[#allocation7 + $0x100] sm:$0xff]
        %v317 = vld [vmem:[#allocation7 + $0x108] sm:$0xff]
        %v318 = vld [vmem:[#allocation7 + $0x110] sm:$0xff]
        %v319 = vld [vmem:[#allocation7 + $0x118] sm:$0xff]
        %v320 = vld [vmem:[#allocation7 + $0x120] sm:$0xff]
        %v321 = vld [vmem:[#allocation7 + $0x128] sm:$0xff]
        %v322 = vld [vmem:[#allocation7 + $0x130] sm:$0xff]
        %v323 = vld [vmem:[#allocation7 + $0x138] sm:$0xff]
        %v324 = vld [vmem:[#allocation7 + $0x140] sm:$0xff]
        %v325 = vld [vmem:[#allocation7 + $0x148] sm:$0xff]
        %v326 = vld [vmem:[#allocation7 + $0x150] sm:$0xff]
        %v327 = vld [vmem:[#allocation7 + $0x158] sm:$0xff]
        %v328 = vld [vmem:[#allocation7 + $0x160] sm:$0xff]
        %v329 = vld [vmem:[#allocation7 + $0x168] sm:$0xff]
        %v330 = vld [vmem:[#allocation7 + $0x170] sm:$0xff]
        %v331 = vld [vmem:[#allocation7 + $0x178] sm:$0xff]
        %v332 = vld [vmem:[#allocation7 + $0x180] sm:$0xff]
        %v333 = vld [vmem:[#allocation7 + $0x188] sm:$0xff]
        %v334 = vld [vmem:[#allocation7 + $0x190] sm:$0xff]
        %v335 = vld [vmem:[#allocation7 + $0x198] sm:$0xff]
        %v336 = vld [vmem:[#allocation7 + $0x1a0] sm:$0xff]
        %v337 = vld [vmem:[#allocation7 + $0x1a8] sm:$0xff]
        %v338 = vld [vmem:[#allocation7 + $0x1b0] sm:$0xff]
        %v339 = vld [vmem:[#allocation7 + $0x1b8] sm:$0xff]
        %v340 = vld [vmem:[#allocation7 + $0x1c0] sm:$0xff]
        %v341 = vld [vmem:[#allocation7 + $0x1c8] sm:$0xff]
        %v342 = vld [vmem:[#allocation7 + $0x1d0] sm:$0xff]
        %v343 = vld [vmem:[#allocation7 + $0x1d8] sm:$0xff]
        %v344 = vld [vmem:[#allocation7 + $0x1e0] sm:$0xff]
        %v345 = vld [vmem:[#allocation7 + $0x1e8] sm:$0xff]
        %v346 = vld [vmem:[#allocation7 + $0x1f0] sm:$0xff]
        %v347 = vld [vmem:[#allocation7 + $0x1f8] sm:$0xff]
        %vm348 = vcmask 523264
        %v350 = vsel %vm348, %v279, 0
        %352 = vmatprep.subr.mxu0 %v285
        %353 = vmatpush1.msra.mxu0 %v284
        %354 = vmatprep.subr.mxu0 %v293
        %355 = vmatpush1.msra.mxu0 %v292
        %356 = vmatprep.subr.mxu0 %v301
        %357 = vmatpush1.msra.mxu0 %v300
        %358 = vmatprep.subr.mxu0 %v309
        %359 = vmatpush1.msra.mxu0 %v308
        %360 = vmatprep.subr.mxu0 %v317
        %361 = vmatpush1.msra.mxu0 %v316
        %362 = vmatprep.subr.mxu0 %v325
        %363 = vmatpush1.msra.mxu0 %v324
        %364 = vmatprep.subr.mxu0 %v333
        %365 = vmatpush1.msra.mxu0 %v332
        %366 = vmatprep.subr.mxu0 %v341
        %367 = vmatpush1.msra.mxu0 %v340
        %368 = vmatprep.subr.mxu0 0.0
        %369 = vmatpush1.msra.mxu0 0.0
        %370 = vmatprep.subr.mxu0 0.0
        %371 = vmatpush1.msra.mxu0 0.0
        %372 = vmatprep.subr.mxu0 0.0
        %373 = vmatpush1.msra.mxu0 0.0
        %374 = vmatprep.subr.mxu0 0.0
        %375 = vmatpush1.msra.mxu0 0.0
        %376 = vmatprep.subr.mxu0 0.0
        %377 = vmatpush1.msra.mxu0 0.0
        %378 = vmatprep.subr.mxu0 0.0
        %379 = vmatpush1.msra.mxu0 0.0
        %380 = vmatprep.subr.mxu0 0.0
        %381 = vmatpush1.msra.mxu0 0.0
        %382 = vmatprep.subr.mxu0 0.0
        %383 = vmatpush1.msra.mxu0 0.0
        %384 = vmatprep.subr.mxu0 0.0
        %385 = vmatpush1.msra.mxu0 0.0
        %386 = vmatprep.subr.mxu0 0.0
        %387 = vmatpush1.msra.mxu0 0.0
        %388 = vmatprep.subr.mxu0 0.0
        %389 = vmatpush1.msra.mxu0 0.0
        %390 = vmatprep.subr.mxu0 0.0
        %391 = vmatpush1.msra.mxu0 0.0
        %392 = vmatprep.subr.mxu0 0.0
        %393 = vmatpush1.msra.mxu0 0.0
        %394 = vmatprep.subr.mxu0 0.0
        %395 = vmatpush1.msra.mxu0 0.0
        %396 = vmatprep.subr.mxu0 0.0
        %397 = vmatpush1.msra.mxu0 0.0
        %398 = vmatprep.subr.mxu0 0.0
        %399 = vmatpush1.msra.mxu0 0.0
        %400 = vmatprep.subr.mxu0 0.0
        %401 = vmatpush1.msra.mxu0 0.0
        %402 = vmatprep.subr.mxu0 0.0
        %403 = vmatpush1.msra.mxu0 0.0
        %404 = vmatprep.subr.mxu0 0.0
        %405 = vmatpush1.msra.mxu0 0.0
        %406 = vmatprep.subr.mxu0 0.0
        %407 = vmatpush1.msra.mxu0 0.0
        %408 = vmatprep.subr.mxu0 0.0
        %409 = vmatpush1.msra.mxu0 0.0
        %410 = vmatprep.subr.mxu0 0.0
        %411 = vmatpush1.msra.mxu0 0.0
        %412 = vmatprep.subr.mxu0 0.0
        %413 = vmatpush1.msra.mxu0 0.0
        %414 = vmatprep.subr.mxu0 0.0
        %415 = vmatpush1.msra.mxu0 0.0
        %416 = vmatprep.mubr.f32.mxu0 0.0
        %417 = vmatmul.mubr.f32.gmra.mrb[0].mxu0 %v350
        %v418 = vpop.f32.mrb[0].mxu0
        %v419 = vadd.f32 0.0, %v418
        %v420 = vpop.f32.mrb[0].mxu0
        %v421 = vadd.f32 0.0, %v420
        %422 = vdwg.mxu0
        %423 = vmatprep.subr.mxu0 %v287
        %424 = vmatpush1.msra.mxu0 %v286
        %425 = vmatprep.subr.mxu0 %v295
        %426 = vmatpush1.msra.mxu0 %v294
        %427 = vmatprep.subr.mxu0 %v303
        %428 = vmatpush1.msra.mxu0 %v302
        %429 = vmatprep.subr.mxu0 %v311
        %430 = vmatpush1.msra.mxu0 %v310
        %431 = vmatprep.subr.mxu0 %v319
        %432 = vmatpush1.msra.mxu0 %v318
        %433 = vmatprep.subr.mxu0 %v327
        %434 = vmatpush1.msra.mxu0 %v326
        %435 = vmatprep.subr.mxu0 %v335
        %436 = vmatpush1.msra.mxu0 %v334
        %437 = vmatprep.subr.mxu0 %v343
        %438 = vmatpush1.msra.mxu0 %v342
        %439 = vmatprep.subr.mxu0 0.0
        %440 = vmatpush1.msra.mxu0 0.0
        %441 = vmatprep.subr.mxu0 0.0
        %442 = vmatpush1.msra.mxu0 0.0
        %443 = vmatprep.subr.mxu0 0.0
        %444 = vmatpush1.msra.mxu0 0.0
        %445 = vmatprep.subr.mxu0 0.0
        %446 = vmatpush1.msra.mxu0 0.0
        %447 = vmatprep.subr.mxu0 0.0
        %448 = vmatpush1.msra.mxu0 0.0
        %449 = vmatprep.subr.mxu0 0.0
        %450 = vmatpush1.msra.mxu0 0.0
        %451 = vmatprep.subr.mxu0 0.0
        %452 = vmatpush1.msra.mxu0 0.0
        %453 = vmatprep.subr.mxu0 0.0
        %454 = vmatpush1.msra.mxu0 0.0
        %455 = vmatprep.subr.mxu0 0.0
        %456 = vmatpush1.msra.mxu0 0.0
        %457 = vmatprep.subr.mxu0 0.0
        %458 = vmatpush1.msra.mxu0 0.0
        %459 = vmatprep.subr.mxu0 0.0
        %460 = vmatpush1.msra.mxu0 0.0
        %461 = vmatprep.subr.mxu0 0.0
        %462 = vmatpush1.msra.mxu0 0.0
        %463 = vmatprep.subr.mxu0 0.0
        %464 = vmatpush1.msra.mxu0 0.0
        %465 = vmatprep.subr.mxu0 0.0
        %466 = vmatpush1.msra.mxu0 0.0
        %467 = vmatprep.subr.mxu0 0.0
        %468 = vmatpush1.msra.mxu0 0.0
        %469 = vmatprep.subr.mxu0 0.0
        %470 = vmatpush1.msra.mxu0 0.0
        %471 = vmatprep.subr.mxu0 0.0
        %472 = vmatpush1.msra.mxu0 0.0
        %473 = vmatprep.subr.mxu0 0.0
        %474 = vmatpush1.msra.mxu0 0.0
        %475 = vmatprep.subr.mxu0 0.0
        %476 = vmatpush1.msra.mxu0 0.0
        %477 = vmatprep.subr.mxu0 0.0
        %478 = vmatpush1.msra.mxu0 0.0
        %479 = vmatprep.subr.mxu0 0.0
        %480 = vmatpush1.msra.mxu0 0.0
        %481 = vmatprep.subr.mxu0 0.0
        %482 = vmatpush1.msra.mxu0 0.0
        %483 = vmatprep.subr.mxu0 0.0
        %484 = vmatpush1.msra.mxu0 0.0
        %485 = vmatprep.subr.mxu0 0.0
        %486 = vmatpush1.msra.mxu0 0.0
        %487 = vmatprep.mubr.f32.mxu0 0.0
        %488 = vmatmul.mubr.f32.gmra.mrb[0].mxu0 %v350
        %v489 = vpop.f32.mrb[0].mxu0
        %v490 = vadd.f32 0.0, %v489
        %v491 = vpop.f32.mrb[0].mxu0
        %v492 = vadd.f32 0.0, %v491
        %493 = vdwg.mxu0
        %494 = vmatprep.subr.mxu0 %v289
        %495 = vmatpush1.msra.mxu0 %v288
        %496 = vmatprep.subr.mxu0 %v297
        %497 = vmatpush1.msra.mxu0 %v296
        %498 = vmatprep.subr.mxu0 %v305
        %499 = vmatpush1.msra.mxu0 %v304
        %500 = vmatprep.subr.mxu0 %v313
        %501 = vmatpush1.msra.mxu0 %v312
        %502 = vmatprep.subr.mxu0 %v321
        %503 = vmatpush1.msra.mxu0 %v320
        %504 = vmatprep.subr.mxu0 %v329
        %505 = vmatpush1.msra.mxu0 %v328
        %506 = vmatprep.subr.mxu0 %v337
        %507 = vmatpush1.msra.mxu0 %v336
        %508 = vmatprep.subr.mxu0 %v345
        %509 = vmatpush1.msra.mxu0 %v344
        %510 = vmatprep.subr.mxu0 0.0
        %511 = vmatpush1.msra.mxu0 0.0
        %512 = vmatprep.subr.mxu0 0.0
        %513 = vmatpush1.msra.mxu0 0.0
        %514 = vmatprep.subr.mxu0 0.0
        %515 = vmatpush1.msra.mxu0 0.0
        %516 = vmatprep.subr.mxu0 0.0
        %517 = vmatpush1.msra.mxu0 0.0
        %518 = vmatprep.subr.mxu0 0.0
        %519 = vmatpush1.msra.mxu0 0.0
        %520 = vmatprep.subr.mxu0 0.0
        %521 = vmatpush1.msra.mxu0 0.0
        %522 = vmatprep.subr.mxu0 0.0
        %523 = vmatpush1.msra.mxu0 0.0
        %524 = vmatprep.subr.mxu0 0.0
        %525 = vmatpush1.msra.mxu0 0.0
        %526 = vmatprep.subr.mxu0 0.0
        %527 = vmatpush1.msra.mxu0 0.0
        %528 = vmatprep.subr.mxu0 0.0
        %529 = vmatpush1.msra.mxu0 0.0
        %530 = vmatprep.subr.mxu0 0.0
        %531 = vmatpush1.msra.mxu0 0.0
        %532 = vmatprep.subr.mxu0 0.0
        %533 = vmatpush1.msra.mxu0 0.0
        %534 = vmatprep.subr.mxu0 0.0
        %535 = vmatpush1.msra.mxu0 0.0
        %536 = vmatprep.subr.mxu0 0.0
        %537 = vmatpush1.msra.mxu0 0.0
        %538 = vmatprep.subr.mxu0 0.0
        %539 = vmatpush1.msra.mxu0 0.0
        %540 = vmatprep.subr.mxu0 0.0
        %541 = vmatpush1.msra.mxu0 0.0
        %542 = vmatprep.subr.mxu0 0.0
        %543 = vmatpush1.msra.mxu0 0.0
        %544 = vmatprep.subr.mxu0 0.0
        %545 = vmatpush1.msra.mxu0 0.0
        %546 = vmatprep.subr.mxu0 0.0
        %547 = vmatpush1.msra.mxu0 0.0
        %548 = vmatprep.subr.mxu0 0.0
        %549 = vmatpush1.msra.mxu0 0.0
        %550 = vmatprep.subr.mxu0 0.0
        %551 = vmatpush1.msra.mxu0 0.0
        %552 = vmatprep.subr.mxu0 0.0
        %553 = vmatpush1.msra.mxu0 0.0
        %554 = vmatprep.subr.mxu0 0.0
        %555 = vmatpush1.msra.mxu0 0.0
        %556 = vmatprep.subr.mxu0 0.0
        %557 = vmatpush1.msra.mxu0 0.0
        %558 = vmatprep.mubr.f32.mxu0 0.0
        %559 = vmatmul.mubr.f32.gmra.mrb[0].mxu0 %v350
        %v560 = vpop.f32.mrb[0].mxu0
        %v561 = vadd.f32 0.0, %v560
        %v562 = vpop.f32.mrb[0].mxu0
        %v563 = vadd.f32 0.0, %v562
        %564 = vdwg.mxu0
        %565 = vmatprep.subr.mxu0 %v291
        %566 = vmatpush1.msra.mxu0 %v290
        %567 = vmatprep.subr.mxu0 %v299
        %568 = vmatpush1.msra.mxu0 %v298
        %569 = vmatprep.subr.mxu0 %v307
        %570 = vmatpush1.msra.mxu0 %v306
        %571 = vmatprep.subr.mxu0 %v315
        %572 = vmatpush1.msra.mxu0 %v314
        %573 = vmatprep.subr.mxu0 %v323
        %574 = vmatpush1.msra.mxu0 %v322
        %575 = vmatprep.subr.mxu0 %v331
        %576 = vmatpush1.msra.mxu0 %v330
        %577 = vmatprep.subr.mxu0 %v339
        %578 = vmatpush1.msra.mxu0 %v338
        %579 = vmatprep.subr.mxu0 %v347
        %580 = vmatpush1.msra.mxu0 %v346
        %581 = vmatprep.subr.mxu0 0.0
        %582 = vmatpush1.msra.mxu0 0.0
        %583 = vmatprep.subr.mxu0 0.0
        %584 = vmatpush1.msra.mxu0 0.0
        %585 = vmatprep.subr.mxu0 0.0
        %586 = vmatpush1.msra.mxu0 0.0
        %587 = vmatprep.subr.mxu0 0.0
        %588 = vmatpush1.msra.mxu0 0.0
        %589 = vmatprep.subr.mxu0 0.0
        %590 = vmatpush1.msra.mxu0 0.0
        %591 = vmatprep.subr.mxu0 0.0
        %592 = vmatpush1.msra.mxu0 0.0
        %593 = vmatprep.subr.mxu0 0.0
        %594 = vmatpush1.msra.mxu0 0.0
        %595 = vmatprep.subr.mxu0 0.0
        %596 = vmatpush1.msra.mxu0 0.0
        %597 = vmatprep.subr.mxu0 0.0
        %598 = vmatpush1.msra.mxu0 0.0
        %599 = vmatprep.subr.mxu0 0.0
        %600 = vmatpush1.msra.mxu0 0.0
        %601 = vmatprep.subr.mxu0 0.0
        %602 = vmatpush1.msra.mxu0 0.0
        %603 = vmatprep.subr.mxu0 0.0
        %604 = vmatpush1.msra.mxu0 0.0
        %605 = vmatprep.subr.mxu0 0.0
        %606 = vmatpush1.msra.mxu0 0.0
        %607 = vmatprep.subr.mxu0 0.0
        %608 = vmatpush1.msra.mxu0 0.0
        %609 = vmatprep.subr.mxu0 0.0
        %610 = vmatpush1.msra.mxu0 0.0
        %611 = vmatprep.subr.mxu0 0.0
        %612 = vmatpush1.msra.mxu0 0.0
        %613 = vmatprep.subr.mxu0 0.0
        %614 = vmatpush1.msra.mxu0 0.0
        %615 = vmatprep.subr.mxu0 0.0
        %616 = vmatpush1.msra.mxu0 0.0
        %617 = vmatprep.subr.mxu0 0.0
        %618 = vmatpush1.msra.mxu0 0.0
        %619 = vmatprep.subr.mxu0 0.0
        %620 = vmatpush1.msra.mxu0 0.0
        %621 = vmatprep.subr.mxu0 0.0
        %622 = vmatpush1.msra.mxu0 0.0
        %623 = vmatprep.subr.mxu0 0.0
        %624 = vmatpush1.msra.mxu0 0.0
        %625 = vmatprep.subr.mxu0 0.0
        %626 = vmatpush1.msra.mxu0 0.0
        %627 = vmatprep.subr.mxu0 0.0
        %628 = vmatpush1.msra.mxu0 0.0
        %629 = vmatprep.mubr.f32.mxu0 0.0
        %630 = vmatmul.mubr.f32.gmra.mrb[0].mxu0 %v350
        %v631 = vpop.f32.mrb[0].mxu0
        %v632 = vadd.f32 0.0, %v631
        %v633 = vpop.f32.mrb[0].mxu0
        %v634 = vadd.f32 0.0, %v633
        %635 = vdwg.mxu0
        %v636 = vsub.f32 1.0, %v419
        %v637 = vsub.f32 1.0, %v421
        %v638 = vsub.f32 1.0, %v490
        %v639 = vsub.f32 1.0, %v492
        %v640 = vsub.f32 1.0, %v561
        %v641 = vsub.f32 1.0, %v563
        %v642 = vsub.f32 1.0, %v632
        %v643 = vsub.f32 1.0, %v634
        %v648 = vcombine.high %v280, %v280
        %v649 = vcombine.high %v281, %v281
        %v650 = vcombine.high %v282, %v282
        %v651 = vcombine.high %v283, %v283
        %v656 = vadd.f32 %v636, %v280
        %v657 = vadd.f32 %v637, %v648
        %v658 = vadd.f32 %v638, %v281
        %v659 = vadd.f32 %v639, %v649
        %v660 = vadd.f32 %v640, %v282
        %v661 = vadd.f32 %v641, %v650
        %v662 = vadd.f32 %v642, %v283
        %v663 = vadd.f32 %v643, %v651
        %v664 = vmax.f32 %v656, 0.0
        %v665 = vmax.f32 %v657, 0.0
        %v666 = vmax.f32 %v658, 0.0
        %v667 = vmax.f32 %v659, 0.0
        %v668 = vmax.f32 %v660, 0.0
        %v669 = vmax.f32 %v661, 0.0
        %v670 = vmax.f32 %v662, 0.0
        %v671 = vmax.f32 %v663, 0.0
        %vm672 = vcmask 1043456
        %v673 = vsel %vm672, %v664, 0.0
        %v674 = vsel %vm672, %v665, 0.0
        %v675 = vadd.f32 %v673, %v674
        %v676 = vsel %vm672, %v666, 0.0
        %v677 = vadd.f32 %v675, %v676
        %v678 = vsel %vm672, %v667, 0.0
        %v679 = vadd.f32 %v677, %v678
        %v680 = vsel %vm672, %v668, 0.0
        %v681 = vadd.f32 %v679, %v680
        %v682 = vsel %vm672, %v669, 0.0
        %v683 = vadd.f32 %v681, %v682
        %v684 = vsel %vm672, %v670, 0.0
        %v685 = vadd.f32 %v683, %v684
        %v686 = vsel %vm672, %v671, 0.0
        %v687 = vadd.f32 %v685, %v686
        %688 = vadd.xlane.f32.xlu0 %v687
        %v689 = vpop.xlane.xlu0 %688
        %s690 = sadd.s32 %s27, %s28
        %s691 = smul.u32 %s690, 4
        %v692 = vlaneseq
        %v693 = vshrl.u32 %v692, 7
        %v694 = vstv %s691
        %v695 = vadd.s32 %v694, %v693
        %vm696 = vcmp.lt.s32.totalorder %v695, 4
        %v697 = vsel %vm696, %v689, 0.0
        %v698 = vld [vmem:[%s267] sm:$0xff]
        %vm699 = vcmask 3072
        %v700 = vsel %vm699, %v697, 0.0
        %701 = vadd.xlane.f32.xlu0 %v700
        %v702 = vpop.xlane.xlu0 %701
        %v703 = vrot.slane %v702, 4
        %v704 = vadd.f32 %v702, %v703
        %v705 = vrot.slane %v704, 2
        %v706 = vadd.f32 %v704, %v705
        %v707 = vrot.slane %v706, 1
        %v708 = vadd.f32 %v706, %v707
        %s709 = vtos %v708
        %v710 = vstv %s709
        %v711 = vadd.f32 %v698, %v710
        %712 = vst [vmem:[%s267] sm:$0xff] %v711
        %s713 = sand.u32 %s128, 1
        %s714 = scalar_lea.sflag [#allocation4], %s713
        %s715 = sand.u32 %s128, 1
        %s716 = smul.addr %s715, 8
        %s717 = scalar_lea.vmem [#allocation8], %s716
        // Predicated region
        $region49: #{tpu_custom_call.1} parent=31 // pred_check
          %p718 = pneg %p138
        $region50: #{tpu_custom_call.1} parent=31 // pred_check_branch
          %720 = sbr.rel (%p718) target = $region52
        $region51: #{tpu_custom_call.1} parent=31 // pred_region
          %s722 = ssub.s32 128, 128
          %723 = vsyncadd %s714, %s722
          %s724 = smul.addr %s27, 128
          %s725 = scalar_lea.hbm %s3, %s724
          %s727 = sshll.u32 %s717, 4
          %s728 = int_to_ptr.vmem [resolvable:$true] %s727
          %730 = dma.vmem_to_hbm [thread:$0]  %s728, 128, %s725, %s714
        $region52: #{tpu_custom_call.1} parent=31 // pred_fallthru
          _
      $region32: #{tpu_custom_call.1} parent=5 // pred_fallthru
        _
      %p731 = scmp.le.s32.totalorder 2, %s18
      // Predicated region
      $region53: #{tpu_custom_call.1} parent=5 // pred_check
        %p732 = pneg %p731
      $region54: #{tpu_custom_call.1} parent=5 // pred_check_branch
        %734 = sbr.rel (%p732) target = $region56
      $region55: #{tpu_custom_call.1} parent=5 // pred_region
        %s735 = ssub.s32 %s18, 2
        // Predicated region
        $region57: #{tpu_custom_call.1} parent=55 // pred_check
          %p736 = pneg %p144
        $region58: #{tpu_custom_call.1} parent=55 // pred_check_branch
          %738 = sbr.rel (%p736) target = $region60
        $region59: #{tpu_custom_call.1} parent=55 // pred_region
          %s739 = sand.u32 %s129, 1
          %s740 = scalar_lea.sflag [#allocation4], %s739
          %s741 = sand.u32 %s129, 1
          %s742 = smul.addr %s741, 8
          %s743 = scalar_lea.vmem [#allocation8], %s742
          %744 = dma.done %s740, 128
        $region60: #{tpu_custom_call.1} parent=55 // pred_fallthru
          _
      $region56: #{tpu_custom_call.1} parent=5 // pred_fallthru
        _
    $region6: #{tpu_custom_call.1} parent=1 // loop_footer
      %s22 = sadd.s32 1, %s18
    $region7: #{tpu_custom_call.1} parent=1 // loop_footer_branch
      %17 = sbr.rel target = $region3
    $region8: #{tpu_custom_call.1} parent=1 // loop_exit
      _
    %745 = vsyncpa [#allocation3], 1
    %s746 = scalar_lea.sflag [#allocation3], 1
    %747 = vsyncpa %s746, 1
    %748 = vsyncpa [#allocation6], 1
    %s749 = scalar_lea.sflag [#allocation6], 1
    %750 = vsyncpa %s749, 1
    %751 = vsyncpa [#allocation4], 1
    %s752 = scalar_lea.sflag [#allocation4], 1
    %753 = vsyncpa %s752, 1

</llo_original>
